<compile_context>
chip_gen: v7x
topology: tpu7x:2x2x1
jax: 0.10.0
libtpu: 0.0.40
codegen_flags: <defaults>
</compile_context>

<pallas_src>
import functools

import jax
import jax.numpy as jnp
from jax.experimental import pallas as pl
from jax.experimental.pallas import tpu as pltpu

EPS = 1e-6
_LANE = 128
_SUBLANE = 8
_MAX_TILE_ROWS = 2048   # 2048 rows * 128 lanes * 4 coords * 4 B = 4 MiB / operand tile
_NUM_CORES = 2          # v7x has 2 TensorCores; harmless (sequential) on v5e/v6e.


def _round_up(x, m):
    return ((x + m - 1) // m) * m


def _plan_tiling(rows, tile_rows):
    """Pick (tile_rows, num_cores, tiles_per_core, padded_rows) for `rows` rows."""
    if tile_rows is None:
        tile_rows = min(_MAX_TILE_ROWS, _round_up(max(rows, 1), _SUBLANE))
    tile_rows = max(_SUBLANE, _round_up(int(tile_rows), _SUBLANE))
    num_tiles = max(1, -(-rows // tile_rows))               # cdiv
    num_cores = _NUM_CORES if num_tiles >= _NUM_CORES else 1
    tiles_per_core = -(-num_tiles // num_cores)              # cdiv
    r_pad = num_cores * tiles_per_core * tile_rows
    return tile_rows, num_cores, tiles_per_core, r_pad


def _giou_loss_kernel(n_ref, pred_ref, targ_ref, out_ref, acc_ref, *, tiles_per_core):
    # n_ref:    SMEM (1,) int32            -- number of valid boxes
    # pred_ref: VMEM (4, tile_rows, 128)   -- coordinate planes x1,y1,x2,y2
    # targ_ref: VMEM (4, tile_rows, 128)
    # out_ref:  VMEM (1, 8, 128)           -- this core's partial sum (broadcast)
    # acc_ref:  VMEM (tile_rows, 128) f32  -- per-core running accumulator
    core = pl.program_id(0)
    i = pl.program_id(1)
    tile_rows = acc_ref.shape[0]

    @pl.when(i == 0)
    def _init():
        acc_ref[...] = jnp.zeros_like(acc_ref)

    px1, py1, px2, py2 = pred_ref[0], pred_ref[1], pred_ref[2], pred_ref[3]
    tx1, ty1, tx2, ty2 = targ_ref[0], targ_ref[1], targ_ref[2], targ_ref[3]

    zero = jnp.float32(0.0)
    eps = jnp.float32(EPS)

    pred_area = jnp.maximum(px2 - px1, zero) * jnp.maximum(py2 - py1, zero)
    targ_area = jnp.maximum(tx2 - tx1, zero) * jnp.maximum(ty2 - ty1, zero)

    inter_w = jnp.maximum(jnp.minimum(px2, tx2) - jnp.maximum(px1, tx1), zero)
    inter_h = jnp.maximum(jnp.minimum(py2, ty2) - jnp.maximum(py1, ty1), zero)
    inter_area = inter_w * inter_h

    union_area = pred_area + targ_area - inter_area + eps
    iou = inter_area / union_area

    enc_w = jnp.maximum(jnp.maximum(px2, tx2) - jnp.minimum(px1, tx1), zero)
    enc_h = jnp.maximum(jnp.maximum(py2, ty2) - jnp.minimum(py1, ty1), zero)
    enc_area = enc_w * enc_h + eps

    giou = jnp.clip(iou - (enc_area - union_area) / enc_area, -1.0, 1.0)
    # giou in [-1, 1]  =>  1 - giou already in [0, 2]; second clamp elided.
    loss = jnp.float32(1.0) - giou

    n = n_ref[0]
    # int32 box index: fine for any realistic N (< 2**31 boxes).
    tile_start = (core * tiles_per_core + i) * (tile_rows * _LANE)
    tile_is_full = tile_start + tile_rows * _LANE <= n

    @pl.when(tile_is_full)
    def _accumulate_fast():          # steady state: no mask work at all
        acc_ref[...] += loss

    @pl.when(jnp.logical_not(tile_is_full))
    def _accumulate_masked():        # only ragged / padding tiles pay for this
        row_idx = jax.lax.broadcasted_iota(jnp.int32, (tile_rows, _LANE), 0)
        lane_idx = jax.lax.broadcasted_iota(jnp.int32, (tile_rows, _LANE), 1)
        box_idx = tile_start + row_idx * _LANE + lane_idx
        acc_ref[...] += jnp.where(box_idx < n, loss, zero)

    @pl.when(i == pl.num_programs(1) - 1)
    def _finalize():
        partial = jnp.sum(acc_ref[...])
        out_ref[...] = jnp.full(out_ref.shape, partial, dtype=out_ref.dtype)


def giou_loss_from_planes(pred_planes, targ_planes, n, *, tile_rows=None):
    """Mean GIoU loss from coordinate-plane inputs (zero-copy producer path).

    pred_planes / targ_planes: f32[4, R, 128]; plane c, row r, lane l holds
    coordinate c of box r*128 + l.  Boxes with index >= n are ignored.
    """
    pred_planes = jnp.asarray(pred_planes, jnp.float32)
    targ_planes = jnp.asarray(targ_planes, jnp.float32)
    if pred_planes.shape != targ_planes.shape:
        raise ValueError(
            f"pred/target plane shape mismatch: {pred_planes.shape} vs {targ_planes.shape}")
    if pred_planes.ndim != 3 or pred_planes.shape[0] != 4 or pred_planes.shape[2] != _LANE:
        raise ValueError(f"expected planes of shape (4, R, 128), got {pred_planes.shape}")

    rows = pred_planes.shape[1]
    tile_rows, num_cores, tiles_per_core, r_pad = _plan_tiling(rows, tile_rows)
    if r_pad != rows:
        pad = ((0, 0), (0, r_pad - rows), (0, 0))
        pred_planes = jnp.pad(pred_planes, pad)
        targ_planes = jnp.pad(targ_planes, pad)

    n_arr = jnp.full((1,), n, dtype=jnp.int32)

    # Working set (per core): 2 inputs * 2 buffers * tile + accumulator.
    tile_bytes = 4 * tile_rows * _LANE * 4
    working_set = 2 * 2 * tile_bytes + tile_rows * _LANE * 4
    try:
        vmem_cap = int(pltpu.get_tpu_info().vmem_capacity_bytes)
    except Exception:
        vmem_cap = 64 << 20   # conservative: v7x physical VMEM per TensorCore
    vmem_limit = min(max(working_set + (8 << 20), 32 << 20), (vmem_cap * 3) // 4)

    grid_spec = pltpu.PrefetchScalarGridSpec(
        num_scalar_prefetch=1,
        grid=(num_cores, tiles_per_core),
        in_specs=[
            pl.BlockSpec((4, tile_rows, _LANE),
                         lambda c, i, n_ref: (0, c * tiles_per_core + i, 0)),
            pl.BlockSpec((4, tile_rows, _LANE),
                         lambda c, i, n_ref: (0, c * tiles_per_core + i, 0)),
        ],
        out_specs=pl.BlockSpec((1, _SUBLANE, _LANE), lambda c, i, n_ref: (c, 0, 0)),
        scratch_shapes=[pltpu.VMEM((tile_rows, _LANE), jnp.float32)],
    )

    partials = pl.pallas_call(
        functools.partial(_giou_loss_kernel, tiles_per_core=tiles_per_core),
        out_shape=jax.ShapeDtypeStruct((num_cores, _SUBLANE, _LANE), jnp.float32),
        grid_spec=grid_spec,
        compiler_params=pltpu.CompilerParams(
            dimension_semantics=("parallel", "arbitrary"),
            vmem_limit_bytes=vmem_limit,
        ),
    )(n_arr, pred_planes, targ_planes)

    loss_sum = jnp.sum(partials[:, 0, 0])
    denom = jnp.asarray(n, jnp.float32)
    return (loss_sum / denom).astype(jnp.float32)


def giou_loss(pred_boxes, target_boxes, tile_rows=None):
    """Mean GIoU loss over N boxes. pred_boxes/target_boxes: [N, 4] (x1,y1,x2,y2)."""
    pred_boxes = jnp.asarray(pred_boxes, jnp.float32)
    target_boxes = jnp.asarray(target_boxes, jnp.float32)

    # --- shape-normalization glue (mirrors the torch module) ---
    if pred_boxes.size == 0 or target_boxes.size == 0:
        return jnp.float32(0.0)
    if pred_boxes.ndim == 1:
        pred_boxes = pred_boxes.reshape(-1, 4)
    if target_boxes.ndim == 1:
        target_boxes = target_boxes.reshape(-1, 4)
    if pred_boxes.shape[1] > 4:
        pred_boxes = pred_boxes[:, :4]
    if target_boxes.shape[1] > 4:
        target_boxes = target_boxes[:, :4]
    if pred_boxes.shape[1] != 4 or target_boxes.shape[1] != 4:
        raise ValueError("boxes must have 4 coordinates (x1, y1, x2, y2)")
    if pred_boxes.shape[0] != target_boxes.shape[0]:
        raise ValueError(
            f"pred/target box count mismatch: {pred_boxes.shape[0]} vs {target_boxes.shape[0]}")

    n = pred_boxes.shape[0]
    rows = -(-n // _LANE)                                     # cdiv(n, 128)
    tile_rows, _, _, r_pad = _plan_tiling(rows, tile_rows)
    pad_boxes = r_pad * _LANE - n

    # [N,4] -> (4, r_pad, 128): contiguous pad + one tiled transpose.
    def to_planes(b):
        b = jnp.pad(b, ((0, pad_boxes), (0, 0)))
        return b.reshape(r_pad, _LANE, 4).transpose(2, 0, 1)

    return giou_loss_from_planes(to_planes(pred_boxes), to_planes(target_boxes),
                                 n, tile_rows=tile_rows)


def _giou_loss_ref(pred_boxes, target_boxes, eps=EPS):
    """Pure-JAX reference (direct transcription of the torch forward)."""
    p = jnp.asarray(pred_boxes, jnp.float32)
    t = jnp.asarray(target_boxes, jnp.float32)
    px1, py1, px2, py2 = p[:, 0], p[:, 1], p[:, 2], p[:, 3]
    tx1, ty1, tx2, ty2 = t[:, 0], t[:, 1], t[:, 2], t[:, 3]
    pa = jnp.clip(px2 - px1, 0) * jnp.clip(py2 - py1, 0)
    ta = jnp.clip(tx2 - tx1, 0) * jnp.clip(ty2 - ty1, 0)
    iw = jnp.clip(jnp.minimum(px2, tx2) - jnp.maximum(px1, tx1), 0)
    ih = jnp.clip(jnp.minimum(py2, ty2) - jnp.maximum(py1, ty1), 0)
    inter = iw * ih
    union = pa + ta - inter + eps
    iou = inter / union
    ew = jnp.clip(jnp.maximum(px2, tx2) - jnp.minimum(px1, tx1), 0)
    eh = jnp.clip(jnp.maximum(py2, ty2) - jnp.minimum(py1, ty1), 0)
    enc = ew * eh + eps
    giou = jnp.clip(iou - (enc - union) / enc, -1.0, 1.0)
    return jnp.clip(1.0 - giou, 0.0, 2.0).mean()


if __name__ == "__main__":
    key = jax.random.PRNGKey(0)

    def make_boxes(k, n):
        ka, kb = jax.random.split(k)
        xy1 = jax.random.uniform(ka, (n, 2), jnp.float32, 0.0, 10.0)
        wh = jax.random.uniform(kb, (n, 2), jnp.float32, 0.5, 5.0)
        return jnp.concatenate([xy1, xy1 + wh], axis=1)      # [N, 4] (x1,y1,x2,y2)

    k1, k2, k3, k4, k5, k6 = jax.random.split(key, 6)

    # Case 1: tiny N (single tile, heavy lane masking).
    N1 = 8
    pred1, targ1 = make_boxes(k1, N1), make_boxes(k2, N1)
    out1 = jax.block_until_ready(giou_loss(pred1, targ1))
    ref1 = _giou_loss_ref(pred1, targ1)
    assert jnp.allclose(out1, ref1, atol=1e-5, rtol=1e-5), (out1, ref1)

    # Case 2: default tiling, non-multiple-of-128 N (ragged masked tile).
    N2 = 2500
    pred2, targ2 = make_boxes(k3, N2), make_boxes(k4, N2)
    out2 = jax.block_until_ready(giou_loss(pred2, targ2))
    ref2 = _giou_loss_ref(pred2, targ2)
    assert jnp.allclose(out2, ref2, atol=1e-5, rtol=1e-5), (out2, ref2)

    # Case 3: forced small tiles -> 2-"core" grid, per-core accumulators,
    # exercises unmasked fast-path tiles, a ragged masked tile and an
    # all-padding tile.
    out3 = jax.block_until_ready(giou_loss(pred2, targ2, tile_rows=8))
    assert jnp.allclose(out3, ref2, atol=1e-5, rtol=1e-5), (out3, ref2)

    # Case 4: exactly aligned N -> all tiles take the unmasked fast path.
    N4 = 2048
    pred4, targ4 = make_boxes(k5, N4), make_boxes(k6, N4)
    out4 = jax.block_until_ready(giou_loss(pred4, targ4, tile_rows=8))
    ref4 = _giou_loss_ref(pred4, targ4)
    assert jnp.allclose(out4, ref4, atol=1e-5, rtol=1e-5), (out4, ref4)

    print("KERNEL_OK")
</pallas_src>

<mosaic_0001>
module attributes {stable_mosaic.version = 11 : i64} {
  func.func @_giou_loss_kernel(%arg0: i32, %arg1: i32, %arg2: memref<1xi32, #tpu.memory_space<smem>>, %arg3: memref<4x8x128xf32, #tpu.memory_space<vmem>>, %arg4: memref<4x8x128xf32, #tpu.memory_space<vmem>>, %arg5: memref<1x8x128xf32, #tpu.memory_space<vmem>>, %arg6: memref<8x128xf32, #tpu.memory_space<vmem>>) attributes {dimension_semantics = [#tpu.dimension_semantics<parallel>, #tpu.dimension_semantics<arbitrary>], iteration_bounds = array<i64: 1, 1>, scalar_prefetch = 1 : i64, scratch_operands = 1 : i64, tpu.core_type = #tpu.core_type<tc>, window_params = [{transform_indices = @transform_0, window_bounds = array<i64: 4, 8, 128>}, {transform_indices = @transform_1, window_bounds = array<i64: 4, 8, 128>}, {transform_indices = @transform_2, window_bounds = array<i64: 1, 8, 128>}]} {
    %c0_i32 = arith.constant 0 : i32
    %0 = arith.cmpi eq, %arg1, %c0_i32 : i32
    %1 = arith.extui %0 : i1 to i32
    %c0_i32_0 = arith.constant 0 : i32
    %2 = arith.cmpi ne, %1, %c0_i32_0 : i32
    scf.if %2 {
      %cst_40 = arith.constant 0.000000e+00 : f32
      %85 = vector.broadcast %cst_40 : f32 to vector<8x128xf32>
      %c0_41 = arith.constant 0 : index
      %c0_42 = arith.constant 0 : index
      %86 = vector.load %arg6[%c0_41, %c0_42] : memref<8x128xf32, #tpu.memory_space<vmem>>, vector<8x128xf32>
      tpu.vector_store %arg6[%c0_41, %c0_42], %85 {strides = array<i32>} : memref<8x128xf32, #tpu.memory_space<vmem>>, vector<8x128xf32>,
    } else {
    }
    %c0 = arith.constant 0 : index
    %c0_1 = arith.constant 0 : index
    %c0_2 = arith.constant 0 : index
    %3 = vector.load %arg3[%c0, %c0_1, %c0_2] : memref<4x8x128xf32, #tpu.memory_space<vmem>>, vector<1x8x128xf32>
    %4 = vector.shape_cast %3 : vector<1x8x128xf32> to vector<8x128xf32>
    %c1 = arith.constant 1 : index
    %c0_3 = arith.constant 0 : index
    %c0_4 = arith.constant 0 : index
    %5 = vector.load %arg3[%c1, %c0_3, %c0_4] : memref<4x8x128xf32, #tpu.memory_space<vmem>>, vector<1x8x128xf32>
    %6 = vector.shape_cast %5 : vector<1x8x128xf32> to vector<8x128xf32>
    %c2 = arith.constant 2 : index
    %c0_5 = arith.constant 0 : index
    %c0_6 = arith.constant 0 : index
    %7 = vector.load %arg3[%c2, %c0_5, %c0_6] : memref<4x8x128xf32, #tpu.memory_space<vmem>>, vector<1x8x128xf32>
    %8 = vector.shape_cast %7 : vector<1x8x128xf32> to vector<8x128xf32>
    %c3 = arith.constant 3 : index
    %c0_7 = arith.constant 0 : index
    %c0_8 = arith.constant 0 : index
    %9 = vector.load %arg3[%c3, %c0_7, %c0_8] : memref<4x8x128xf32, #tpu.memory_space<vmem>>, vector<1x8x128xf32>
    %10 = vector.shape_cast %9 : vector<1x8x128xf32> to vector<8x128xf32>
    %c0_9 = arith.constant 0 : index
    %c0_10 = arith.constant 0 : index
    %c0_11 = arith.constant 0 : index
    %11 = vector.load %arg4[%c0_9, %c0_10, %c0_11] : memref<4x8x128xf32, #tpu.memory_space<vmem>>, vector<1x8x128xf32>
    %12 = vector.shape_cast %11 : vector<1x8x128xf32> to vector<8x128xf32>
    %c1_12 = arith.constant 1 : index
    %c0_13 = arith.constant 0 : index
    %c0_14 = arith.constant 0 : index
    %13 = vector.load %arg4[%c1_12, %c0_13, %c0_14] : memref<4x8x128xf32, #tpu.memory_space<vmem>>, vector<1x8x128xf32>
    %14 = vector.shape_cast %13 : vector<1x8x128xf32> to vector<8x128xf32>
    %c2_15 = arith.constant 2 : index
    %c0_16 = arith.constant 0 : index
    %c0_17 = arith.constant 0 : index
    %15 = vector.load %arg4[%c2_15, %c0_16, %c0_17] : memref<4x8x128xf32, #tpu.memory_space<vmem>>, vector<1x8x128xf32>
    %16 = vector.shape_cast %15 : vector<1x8x128xf32> to vector<8x128xf32>
    %c3_18 = arith.constant 3 : index
    %c0_19 = arith.constant 0 : index
    %c0_20 = arith.constant 0 : index
    %17 = vector.load %arg4[%c3_18, %c0_19, %c0_20] : memref<4x8x128xf32, #tpu.memory_space<vmem>>, vector<1x8x128xf32>
    %18 = vector.shape_cast %17 : vector<1x8x128xf32> to vector<8x128xf32>
    %19 = arith.subf %8, %4 : vector<8x128xf32>
    %cst = arith.constant 0.000000e+00 : f32
    %20 = vector.broadcast %cst : f32 to vector<8x128xf32>
    %21 = arith.maximumf %19, %20 : vector<8x128xf32>
    %22 = arith.subf %10, %6 : vector<8x128xf32>
    %cst_21 = arith.constant 0.000000e+00 : f32
    %23 = vector.broadcast %cst_21 : f32 to vector<8x128xf32>
    %24 = arith.maximumf %22, %23 : vector<8x128xf32>
    %25 = arith.mulf %21, %24 : vector<8x128xf32>
    %26 = arith.subf %16, %12 : vector<8x128xf32>
    %cst_22 = arith.constant 0.000000e+00 : f32
    %27 = vector.broadcast %cst_22 : f32 to vector<8x128xf32>
    %28 = arith.maximumf %26, %27 : vector<8x128xf32>
    %29 = arith.subf %18, %14 : vector<8x128xf32>
    %cst_23 = arith.constant 0.000000e+00 : f32
    %30 = vector.broadcast %cst_23 : f32 to vector<8x128xf32>
    %31 = arith.maximumf %29, %30 : vector<8x128xf32>
    %32 = arith.mulf %28, %31 : vector<8x128xf32>
    %33 = arith.minimumf %8, %16 : vector<8x128xf32>
    %34 = arith.maximumf %4, %12 : vector<8x128xf32>
    %35 = arith.subf %33, %34 : vector<8x128xf32>
    %cst_24 = arith.constant 0.000000e+00 : f32
    %36 = vector.broadcast %cst_24 : f32 to vector<8x128xf32>
    %37 = arith.maximumf %35, %36 : vector<8x128xf32>
    %38 = arith.minimumf %10, %18 : vector<8x128xf32>
    %39 = arith.maximumf %6, %14 : vector<8x128xf32>
    %40 = arith.subf %38, %39 : vector<8x128xf32>
    %cst_25 = arith.constant 0.000000e+00 : f32
    %41 = vector.broadcast %cst_25 : f32 to vector<8x128xf32>
    %42 = arith.maximumf %40, %41 : vector<8x128xf32>
    %43 = arith.mulf %37, %42 : vector<8x128xf32>
    %44 = arith.addf %25, %32 : vector<8x128xf32>
    %45 = arith.subf %44, %43 : vector<8x128xf32>
    %cst_26 = arith.constant 9.99999997E-7 : f32
    %46 = vector.broadcast %cst_26 : f32 to vector<8x128xf32>
    %47 = arith.addf %45, %46 : vector<8x128xf32>
    %48 = arith.divf %43, %47 : vector<8x128xf32>
    %49 = arith.maximumf %8, %16 : vector<8x128xf32>
    %50 = arith.minimumf %4, %12 : vector<8x128xf32>
    %51 = arith.subf %49, %50 : vector<8x128xf32>
    %cst_27 = arith.constant 0.000000e+00 : f32
    %52 = vector.broadcast %cst_27 : f32 to vector<8x128xf32>
    %53 = arith.maximumf %51, %52 : vector<8x128xf32>
    %54 = arith.maximumf %10, %18 : vector<8x128xf32>
    %55 = arith.minimumf %6, %14 : vector<8x128xf32>
    %56 = arith.subf %54, %55 : vector<8x128xf32>
    %cst_28 = arith.constant 0.000000e+00 : f32
    %57 = vector.broadcast %cst_28 : f32 to vector<8x128xf32>
    %58 = arith.maximumf %56, %57 : vector<8x128xf32>
    %59 = arith.mulf %53, %58 : vector<8x128xf32>
    %cst_29 = arith.constant 9.99999997E-7 : f32
    %60 = vector.broadcast %cst_29 : f32 to vector<8x128xf32>
    %61 = arith.addf %59, %60 : vector<8x128xf32>
    %62 = arith.subf %61, %47 : vector<8x128xf32>
    %63 = arith.divf %62, %61 : vector<8x128xf32>
    %64 = arith.subf %48, %63 : vector<8x128xf32>
    %cst_30 = arith.constant -1.000000e+00 : f32
    %cst_31 = arith.constant 1.000000e+00 : f32
    %65 = vector.broadcast %cst_30 : f32 to vector<8x128xf32>
    %66 = arith.maximumf %65, %64 : vector<8x128xf32>
    %67 = vector.broadcast %cst_31 : f32 to vector<8x128xf32>
    %68 = arith.minimumf %67, %66 : vector<8x128xf32>
    %cst_32 = arith.constant 1.000000e+00 : f32
    %69 = vector.broadcast %cst_32 : f32 to vector<8x128xf32>
    %70 = arith.subf %69, %68 : vector<8x128xf32>
    %c0_33 = arith.constant 0 : index
    %71 = memref.load %arg2[%c0_33] : memref<1xi32, #tpu.memory_space<smem>>
    %c1_i32 = arith.constant 1 : i32
    %72 = arith.muli %arg0, %c1_i32 : i32
    %73 = arith.addi %72, %arg1 : i32
    %c1024_i32 = arith.constant 1024 : i32
    %74 = arith.muli %73, %c1024_i32 : i32
    %c1024_i32_34 = arith.constant 1024 : i32
    %75 = arith.addi %74, %c1024_i32_34 : i32
    %76 = arith.cmpi sle, %75, %71 : i32
    %77 = arith.extui %76 : i1 to i32
    %c0_i32_35 = arith.constant 0 : i32
    %78 = arith.cmpi ne, %77, %c0_i32_35 : i32
    scf.if %78 {
      %c0_40 = arith.constant 0 : index
      %c0_41 = arith.constant 0 : index
      %85 = vector.load %arg6[%c0_40, %c0_41] : memref<8x128xf32, #tpu.memory_space<vmem>>, vector<8x128xf32>
      %86 = arith.addf %85, %70 : vector<8x128xf32>
      %c0_42 = arith.constant 0 : index
      %c0_43 = arith.constant 0 : index
      %87 = vector.load %arg6[%c0_42, %c0_43] : memref<8x128xf32, #tpu.memory_space<vmem>>, vector<8x128xf32>
      tpu.vector_store %arg6[%c0_42, %c0_43], %86 {strides = array<i32>} : memref<8x128xf32, #tpu.memory_space<vmem>>, vector<8x128xf32>,
    } else {
    }
    %true = arith.constant true
    %79 = arith.xori %76, %true : i1
    %80 = arith.extui %79 : i1 to i32
    %cst_36 = arith.constant 0.000000e+00 : f32
    %c0_i32_37 = arith.constant 0 : i32
    %81 = arith.cmpi ne, %80, %c0_i32_37 : i32
    scf.if %81 {
      %85 = tpu.iota {dimensions = array<i32: 0>} : vector<8x128xi32>
      %86 = tpu.iota {dimensions = array<i32: 1>} : vector<8x128xi32>
      %c128_i32 = arith.constant 128 : i32
      %87 = vector.broadcast %c128_i32 : i32 to vector<8x128xi32>
      %88 = arith.muli %85, %87 : vector<8x128xi32>
      %89 = vector.broadcast %74 : i32 to vector<8x128xi32>
      %90 = arith.addi %89, %88 : vector<8x128xi32>
      %91 = arith.addi %90, %86 : vector<8x128xi32>
      %c0_40 = arith.constant 0 : index
      %c0_41 = arith.constant 0 : index
      %92 = vector.load %arg6[%c0_40, %c0_41] : memref<8x128xf32, #tpu.memory_space<vmem>>, vector<8x128xf32>
      %93 = vector.broadcast %71 : i32 to vector<8x128xi32>
      %94 = arith.cmpi slt, %91, %93 : vector<8x128xi32>
      %95 = vector.broadcast %cst_36 : f32 to vector<8x128xf32>
      %96 = arith.select %94, %70, %95 : vector<8x128xi1>, vector<8x128xf32>
      %97 = arith.addf %92, %96 : vector<8x128xf32>
      %c0_42 = arith.constant 0 : index
      %c0_43 = arith.constant 0 : index
      %98 = vector.load %arg6[%c0_42, %c0_43] : memref<8x128xf32, #tpu.memory_space<vmem>>, vector<8x128xf32>
      tpu.vector_store %arg6[%c0_42, %c0_43], %97 {strides = array<i32>} : memref<8x128xf32, #tpu.memory_space<vmem>>, vector<8x128xf32>,
    } else {
    }
    %c0_i32_38 = arith.constant 0 : i32
    %82 = arith.cmpi eq, %arg1, %c0_i32_38 : i32
    %83 = arith.extui %82 : i1 to i32
    %c0_i32_39 = arith.constant 0 : i32
    %84 = arith.cmpi ne, %83, %c0_i32_39 : i32
    scf.if %84 {
      %c0_40 = arith.constant 0 : index
      %c0_41 = arith.constant 0 : index
      %85 = vector.load %arg6[%c0_40, %c0_41] : memref<8x128xf32, #tpu.memory_space<vmem>>, vector<8x128xf32>
      %86 = vector.shape_cast %85 : vector<8x128xf32> to vector<1x8x128xf32>
      %cst_42 = arith.constant dense<0.000000e+00> : vector<1xf32>
      %87 = vector.multi_reduction <add>, %86, %cst_42 [1, 2] : vector<1x8x128xf32> to vector<1xf32>
      %88 = vector.shape_cast %87 : vector<1xf32> to vector<1x1x1xf32>
      %89 = vector.extract %88[0, 0, 0] : f32 from vector<1x1x1xf32>
      %90 = vector.broadcast %89 : f32 to vector<1x8x128xf32>
      %c0_43 = arith.constant 0 : index
      %c0_44 = arith.constant 0 : index
      %c0_45 = arith.constant 0 : index
      %91 = vector.load %arg5[%c0_43, %c0_44, %c0_45] : memref<1x8x128xf32, #tpu.memory_space<vmem>>, vector<1x8x128xf32>
      tpu.vector_store %arg5[%c0_43, %c0_44, %c0_45], %90 {strides = array<i32>} : memref<1x8x128xf32, #tpu.memory_space<vmem>>, vector<1x8x128xf32>,
    } else {
    }
    return
  }
  func.func @transform_0(%arg0: i32, %arg1: i32, %arg2: memref<1xi32, #tpu.memory_space<smem>>) -> (i32, i32, i32) {
    %c1_i32 = arith.constant 1 : i32
    %0 = arith.muli %arg0, %c1_i32 : i32
    %1 = arith.addi %0, %arg1 : i32
    %c0_i32 = arith.constant 0 : i32
    %c0_i32_0 = arith.constant 0 : i32
    %c0_i32_1 = arith.constant 0 : i32
    return %c0_i32, %1, %c0_i32_0 : i32, i32, i32
  }
  func.func @transform_1(%arg0: i32, %arg1: i32, %arg2: memref<1xi32, #tpu.memory_space<smem>>) -> (i32, i32, i32) {
    %c1_i32 = arith.constant 1 : i32
    %0 = arith.muli %arg0, %c1_i32 : i32
    %1 = arith.addi %0, %arg1 : i32
    %c0_i32 = arith.constant 0 : i32
    %c0_i32_0 = arith.constant 0 : i32
    %c0_i32_1 = arith.constant 0 : i32
    return %c0_i32, %1, %c0_i32_0 : i32, i32, i32
  }
  func.func @transform_2(%arg0: i32, %arg1: i32, %arg2: memref<1xi32, #tpu.memory_space<smem>>) -> (i32, i32, i32) {
    %c0_i32 = arith.constant 0 : i32
    %c0_i32_0 = arith.constant 0 : i32
    %c0_i32_1 = arith.constant 0 : i32
    return %arg0, %c0_i32, %c0_i32_0 : i32, i32, i32
  }
}

</mosaic_0001>

<llo_original>
// kernel: tpu_custom_call.1
$region0: #{tpu_custom_call.1}
  #allocation0 [shape = 'u32[]', space=smem, size = 0x4, offset = 0x4, fixed_abs, tag = 'smem constant byte address 0x4 - core index']
  #allocation1 [shape = 'u32[144,128]{1,0:T(1,128)}', space=vmem, size = 0x12000, scoped, tag = 'internal scratch']
  #allocation2 [shape = 'f32[8,128]{1,0:T(8,128)}', space=vmem, size = 0x1000, scoped, tag = 'scratch operand']
  #allocation3 [shape = 's32[1]{0}', space=sflag, size = 0x4, scoped, tag = 'scoped memory for tpu_custom_call.1']
  #allocation4 [shape = 's32[1]{0:T(128)S(6)}', space=smem, size = 0x200, scoped, tag = 'prefetched SMEM operand 0']
  %s0 = inlined_call_operand.<no memory space> [shape: s32[1], index: 0, kind: input, shape index: {}]
  %s1 = inlined_call_operand.hbm [shape: f32[4,8,128], index: 1, kind: input, shape index: {}]
  %s2 = inlined_call_operand.hbm [shape: f32[4,8,128], index: 2, kind: input, shape index: {}]
  %s3 = inlined_call_operand.hbm [shape: f32[1,8,128], index: 3, kind: output, shape index: {}]
  %s4 = sld [smem:[#allocation0]]
  $region42: #{tpu_custom_call.1} parent=0
    _
  %s6 = ssub.s32 1, %s4
  %s7 = scalar_select 0, %s6, %s4
  %8 = sst [smem:[#allocation4]] %s0
  $region1: #{tpu_custom_call.1} parent=0
    #allocation5 [shape = 'u8[16384]{0}', space=vmem, size = 0x4000, scoped, tag = 'input window, operand 1, single buffered']
    #allocation6 [shape = 's32[1]{0}', space=sflag, size = 0x4, scoped, tag = 'scoped memory for tpu_custom_call.1']
    #allocation7 [shape = 's32[1]{0}', space=sflag, size = 0x4, scoped, tag = 'scoped memory for tpu_custom_call.1']
    #allocation8 [shape = 'u8[16384]{0}', space=vmem, size = 0x4000, scoped, tag = 'input window, operand 2, single buffered']
    #allocation9 [shape = 's32[1]{0}', space=sflag, size = 0x4, scoped, tag = 'scoped memory for tpu_custom_call.1']
    #allocation10 [shape = 'u8[4096]{0}', space=vmem, size = 0x1000, scoped, tag = 'output window, operand 0, single buffered']
    %9 = vsyncpa [#allocation6], 0
    %10 = vsyncpa [#allocation9], 0
    %11 = vsyncpa [#allocation7], 0
    // Predicated region
    $region2: #{tpu_custom_call.1} parent=1 // pred_check
      _
    $region3: #{tpu_custom_call.1} parent=1 // pred_check_branch
      %13 = sbr.rel (0) target = $region5
    $region4: #{tpu_custom_call.1} parent=1 // pred_region
      %s14 = sadd.s32 0, 0
      %s16 = ssub.s32 512, 512
      %17 = vsyncadd [#allocation6], %s16
      %s18 = smul.addr %s14, 128
      %s19 = scalar_lea.hbm %s1, %s18
      %s20 = sshll.u32 [#allocation5], 4
      %s21 = int_to_ptr.vmem [resolvable:$true] %s20
      %26 = dma.hbm_to_vmem [thread:$0]  %s19, 512, %s21, [#allocation6], 128, 128, 8
    $region5: #{tpu_custom_call.1} parent=1 // pred_fallthru
      _
    // Predicated region
    $region6: #{tpu_custom_call.1} parent=1 // pred_check
      _
    $region7: #{tpu_custom_call.1} parent=1 // pred_check_branch
      %28 = sbr.rel (0) target = $region9
    $region8: #{tpu_custom_call.1} parent=1 // pred_region
      %s29 = sadd.s32 0, 0
      %s31 = ssub.s32 512, 512
      %32 = vsyncadd [#allocation9], %s31
      %s33 = smul.addr %s29, 128
      %s34 = scalar_lea.hbm %s2, %s33
      %s35 = sshll.u32 [#allocation8], 4
      %s36 = int_to_ptr.vmem [resolvable:$true] %s35
      %41 = dma.hbm_to_vmem [thread:$0]  %s34, 512, %s36, [#allocation9], 128, 128, 8
    $region9: #{tpu_custom_call.1} parent=1 // pred_fallthru
      _
    // Predicated region
    $region10: #{tpu_custom_call.1} parent=1 // pred_check
      _
    $region11: #{tpu_custom_call.1} parent=1 // pred_check_branch
      %43 = sbr.rel (0) target = $region13
    $region12: #{tpu_custom_call.1} parent=1 // pred_region
      %44 = dma.done [#allocation6], 512
    $region13: #{tpu_custom_call.1} parent=1 // pred_fallthru
      _
    // Predicated region
    $region14: #{tpu_custom_call.1} parent=1 // pred_check
      _
    $region15: #{tpu_custom_call.1} parent=1 // pred_check_branch
      %46 = sbr.rel (0) target = $region17
    $region16: #{tpu_custom_call.1} parent=1 // pred_region
      %47 = dma.done [#allocation9], 512
    $region17: #{tpu_custom_call.1} parent=1 // pred_fallthru
      _
    %s48 = sadd.s32 0, 0
    %s49 = sadd.s32 0, 0
    %p50 = scmp.eq.s32.totalorder 0, 0
    // Predicated region
    $region18: #{tpu_custom_call.1} parent=1 // pred_check
      %p51 = pneg %p50
    $region19: #{tpu_custom_call.1} parent=1 // pred_check_branch
      %53 = sbr.rel (%p51) target = $region21
    $region20: #{tpu_custom_call.1} parent=1 // pred_region
      %54 = vst [vmem:[#allocation2] sm:$0xff] 0.0
    $region21: #{tpu_custom_call.1} parent=1 // pred_fallthru
      _
    %v55 = vld [vmem:[#allocation5] sm:$0xff]
    %s56 = scalar_lea.vmem [#allocation5], 8
    %v57 = vld [vmem:[%s56] sm:$0xff]
    %s58 = scalar_lea.vmem [#allocation5], 16
    %v59 = vld [vmem:[%s58] sm:$0xff]
    %s60 = scalar_lea.vmem [#allocation5], 24
    %v61 = vld [vmem:[%s60] sm:$0xff]
    %v62 = vld [vmem:[#allocation8] sm:$0xff]
    %s63 = scalar_lea.vmem [#allocation8], 8
    %v64 = vld [vmem:[%s63] sm:$0xff]
    %s65 = scalar_lea.vmem [#allocation8], 16
    %v66 = vld [vmem:[%s65] sm:$0xff]
    %s67 = scalar_lea.vmem [#allocation8], 24
    %v68 = vld [vmem:[%s67] sm:$0xff]
    %v69 = vsub.f32 %v59, %v55
    %v70 = vmax.f32 %v69, 0.0
    %v71 = vsub.f32 %v61, %v57
    %v72 = vmax.f32 %v71, 0.0
    %v73 = vmul.f32 %v70, %v72
    %v74 = vsub.f32 %v66, %v62
    %v75 = vmax.f32 %v74, 0.0
    %v76 = vsub.f32 %v68, %v64
    %v77 = vmax.f32 %v76, 0.0
    %v78 = vmul.f32 %v75, %v77
    %v79 = vmin.f32 %v59, %v66
    %v80 = vmax.f32 %v55, %v62
    %v81 = vsub.f32 %v79, %v80
    %v82 = vmax.f32 %v81, 0.0
    %v83 = vmin.f32 %v61, %v68
    %v84 = vmax.f32 %v57, %v64
    %v85 = vsub.f32 %v83, %v84
    %v86 = vmax.f32 %v85, 0.0
    %v87 = vmul.f32 %v82, %v86
    %v88 = vadd.f32 %v73, %v78
    %v89 = vsub.f32 %v88, %v87
    %v90 = vadd.f32 %v89, 1e-06
    %v91 = vrcp.pop %v90
    %v92 = vmul.f32 %v87, %v91
    %v93 = vmax.f32 %v59, %v66
    %v94 = vmin.f32 %v55, %v62
    %v95 = vsub.f32 %v93, %v94
    %v96 = vmax.f32 %v95, 0.0
    %v97 = vmax.f32 %v61, %v68
    %v98 = vmin.f32 %v57, %v64
    %v99 = vsub.f32 %v97, %v98
    %v100 = vmax.f32 %v99, 0.0
    %v101 = vmul.f32 %v96, %v100
    %v102 = vadd.f32 %v101, 1e-06
    %v103 = vsub.f32 %v102, %v90
    %v104 = vrcp.pop %v102
    %v105 = vmul.f32 %v103, %v104
    %v106 = vsub.f32 %v92, %v105
    %v107 = vmax.f32 %v106, -1.0
    %v108 = vmin.f32 %v107, 1.0
    %v109 = vsub.f32 1.0, %v108
    %s110 = sld [smem:[#allocation4]]
    %s111 = sadd.s32 0, 0
    %s112 = smul.u32 %s111, 1024
    %s113 = sadd.s32 %s112, 1024
    %p114 = scmp.le.s32.totalorder %s113, %s110
    // Predicated region
    $region22: #{tpu_custom_call.1} parent=1 // pred_check
      %p115 = pneg %p114
    $region23: #{tpu_custom_call.1} parent=1 // pred_check_branch
      %117 = sbr.rel (%p115) target = $region25
    $region24: #{tpu_custom_call.1} parent=1 // pred_region
      %v118 = vld [vmem:[#allocation2] sm:$0xff]
      %v119 = vadd.f32 %v118, %v109
      %120 = vst [vmem:[#allocation2] sm:$0xff] %v119
    $region25: #{tpu_custom_call.1} parent=1 // pred_fallthru
      _
    %p121 = pneg %p114
    // Predicated region
    $region26: #{tpu_custom_call.1} parent=1 // pred_check
      _
    $region27: #{tpu_custom_call.1} parent=1 // pred_check_branch
      %123 = sbr.rel (%p114) target = $region29
    $region28: #{tpu_custom_call.1} parent=1 // pred_region
      %v124 = vlaneseq
      %v125 = vshrl.u32 %v124, 7
      %v126 = vlaneseq
      %v127 = vand.u32 %v126, 127
      %v128 = vmul.u32 %v125, 128
      %v129 = vstv %s112
      %v130 = vadd.s32 %v129, %v128
      %v131 = vadd.s32 %v130, %v127
      %v132 = vld [vmem:[#allocation2] sm:$0xff]
      %v133 = vstv %s110
      %vm134 = vcmp.lt.s32.totalorder %v131, %v133
      %v135 = vsel %vm134, %v109, 0.0
      %v136 = vadd.f32 %v132, %v135
      %137 = vst [vmem:[#allocation2] sm:$0xff] %v136
    $region29: #{tpu_custom_call.1} parent=1 // pred_fallthru
      _
    // Predicated region
    $region30: #{tpu_custom_call.1} parent=1 // pred_check
      %p138 = pneg %p50
    $region31: #{tpu_custom_call.1} parent=1 // pred_check_branch
      %140 = sbr.rel (%p138) target = $region33
    $region32: #{tpu_custom_call.1} parent=1 // pred_region
      %v141 = vld [vmem:[#allocation2] sm:$0xff]
      %142 = vadd.xlane.f32.xlu0 %v141
      %v143 = vpop.xlane.xlu0 %142
      %v144 = vrot.slane %v143, 4
      %v145 = vadd.f32 %v143, %v144
      %v146 = vrot.slane %v145, 2
      %v147 = vadd.f32 %v145, %v146
      %v148 = vrot.slane %v147, 1
      %v149 = vadd.f32 %v147, %v148
      %s150 = vtos %v149
      %v151 = vstv %s150
      %152 = vst [vmem:[#allocation10] sm:$0xff] %v151
    $region33: #{tpu_custom_call.1} parent=1 // pred_fallthru
      _
    // Predicated region
    $region34: #{tpu_custom_call.1} parent=1 // pred_check
      _
    $region35: #{tpu_custom_call.1} parent=1 // pred_check_branch
      %154 = sbr.rel (0) target = $region37
    $region36: #{tpu_custom_call.1} parent=1 // pred_region
      %s156 = ssub.s32 128, 128
      %157 = vsyncadd [#allocation7], %s156
      %s159 = sshll.u32 [#allocation10], 4
      %s160 = int_to_ptr.vmem [resolvable:$true] %s159
      %162 = dma.vmem_to_hbm [thread:$0]  %s160, 128, %s3, [#allocation7]
    $region37: #{tpu_custom_call.1} parent=1 // pred_fallthru
      _
    // Predicated region
    $region38: #{tpu_custom_call.1} parent=1 // pred_check
      _
    $region39: #{tpu_custom_call.1} parent=1 // pred_check_branch
      %164 = sbr.rel (0) target = $region41
    $region40: #{tpu_custom_call.1} parent=1 // pred_region
      %165 = dma.done [#allocation7], 128
    $region41: #{tpu_custom_call.1} parent=1 // pred_fallthru
      _
    %166 = vsyncpa [#allocation6], 1
    %167 = vsyncpa [#allocation9], 1
    %168 = vsyncpa [#allocation7], 1

</llo_original>
